<compile_context>
chip_gen: v7x
topology: tpu7x:2x2x1
jax: 0.10.0
libtpu: 0.0.40
codegen_flags: <defaults>
</compile_context>

<pallas_src>
import functools

import jax
import jax.numpy as jnp
import numpy as np
from jax.experimental import pallas as pl
from jax.experimental.pallas import tpu as pltpu

EPS = 1e-5


def _residual_block_kernel(x_ref, w1_ref, w2_ref, wadj_ref, pvec_ref, o_ref, *, L):
    # x_ref   : (Cin,  N*L)   channel-major, batch folded into the lane axis
    # w1_ref  : (Cout, K*Cin) im2col conv1 weights (column index = k*Cin + c)
    # w2_ref  : (Cout, K*Cout)
    # wadj_ref: (Cout, Cin)   1x1 channel-adjust conv
    # pvec_ref: (Cout, 8)     packed per-channel params [b1,g1,be1,b2,g2,be2,badj,0]
    # o_ref   : (Cout, N*L)
    _, NL = x_ref.shape

    x = x_ref[...]
    w1 = w1_ref[...]
    w2 = w2_ref[...]
    wadj = wadj_ref[...]
    pv = pvec_ref[...]
    b1, g1, be1 = pv[:, 0:1], pv[:, 1:2], pv[:, 2:3]
    b2, g2, be2 = pv[:, 3:4], pv[:, 4:5], pv[:, 5:6]
    badj = pv[:, 6:7]

    # Position-within-sample along the folded lane axis (marks sample boundaries
    # so the pad=1 zero padding stays per-sample).
    pos = jax.lax.broadcasted_iota(jnp.int32, (1, NL), 1) % L
    is_first = pos == 0
    is_last = pos == (L - 1)

    def im2col3(a):
        """(C, N*L) -> (3*C, N*L): shifted taps k=0,1,2 of a K=3, pad=1 conv."""
        C = a.shape[0]
        z = jnp.zeros((C, 1), jnp.float32)
        sr = jnp.concatenate([z, a[:, : NL - 1]], axis=1)   # shift right by 1
        sl = jnp.concatenate([a[:, 1:], z], axis=1)         # shift left by 1
        left = jnp.where(is_first, 0.0, sr)                 # tap k=0 -> x[l-1]
        right = jnp.where(is_last, 0.0, sl)                 # tap k=2 -> x[l+1]
        return jnp.concatenate([left, a, right], axis=0)

    def bn(y, g, be):
        """Training-mode BN over (N, L) per channel, fused to one scale/shift (f32)."""
        mu = jnp.mean(y, axis=1, keepdims=True)
        ms = jnp.mean(y * y, axis=1, keepdims=True)
        inv = jax.lax.rsqrt((ms - mu * mu) + EPS)
        scale = g * inv
        shift = be - mu * scale
        return y * scale + shift

    # conv1 -> bn1 -> relu  (single lane-dense MXU matmul)
    h = jnp.dot(w1, im2col3(x), preferred_element_type=jnp.float32) + b1
    h = jnp.maximum(bn(h, g1, be1), 0.0)

    # conv2 -> bn2
    o = jnp.dot(w2, im2col3(h), preferred_element_type=jnp.float32) + b2
    o = bn(o, g2, be2)

    # identity path: 1x1 conv (in_channels != out_channels)
    ident = jnp.dot(wadj, x, preferred_element_type=jnp.float32) + badj

    # residual add + relu, lane-dense store
    o_ref[...] = jnp.maximum(o + ident, 0.0)


def residual_block(x, params):
    """x: (N, Cin, L) float32; params: conv/bn weights with PyTorch shapes."""
    w1, b1, g1, be1, w2, b2, g2, be2, wadj, badj = params
    N, Cin, L = x.shape
    Cout, _, K = w1.shape
    NL = N * L

    # Layout plumbing in the wrapper: channel-major, batch folded into lanes.
    x2d = jnp.transpose(x, (1, 0, 2)).reshape(Cin, NL).astype(jnp.float32)
    w1col = jnp.transpose(w1, (0, 2, 1)).reshape(Cout, K * Cin).astype(jnp.float32)
    w2col = jnp.transpose(w2, (0, 2, 1)).reshape(Cout, K * Cout).astype(jnp.float32)
    wadj2d = wadj[:, :, 0].astype(jnp.float32)
    pvec = jnp.stack(
        [b1, g1, be1, b2, g2, be2, badj, jnp.zeros_like(badj)], axis=1
    ).astype(jnp.float32)                                    # (Cout, 8)

    vmem = pl.BlockSpec(memory_space=pltpu.MemorySpace.VMEM)
    out2d = pl.pallas_call(
        functools.partial(_residual_block_kernel, L=L),
        out_shape=jax.ShapeDtypeStruct((Cout, NL), jnp.float32),
        in_specs=[vmem] * 5,
        out_specs=vmem,
        # Note: single-block, grid-less call. BN needs global (N, L) statistics, so
        # tiling over N/L would require a cross-tile accumulator; at these shapes the
        # whole problem fits comfortably in one VMEM block.
    )(x2d, w1col, w2col, wadj2d, pvec)

    return jnp.transpose(out2d.reshape(Cout, N, L), (1, 0, 2))


def residual_block_ref(x, params):
    """Pure-JAX reference mirroring the PyTorch forward (training-mode BN)."""
    w1, b1, g1, be1, w2, b2, g2, be2, wadj, badj = params

    def conv1d(x, w, b, pad):
        y = jax.lax.conv_general_dilated(
            x, w, window_strides=(1,), padding=[(pad, pad)],
            dimension_numbers=('NCH', 'OIH', 'NCH'))
        return y + b[None, :, None]

    def bn(x, g, be):
        mu = jnp.mean(x, axis=(0, 2), keepdims=True)
        var = jnp.mean((x - mu) ** 2, axis=(0, 2), keepdims=True)
        return (x - mu) * jax.lax.rsqrt(var + EPS) * g[None, :, None] + be[None, :, None]

    h = jax.nn.relu(bn(conv1d(x, w1, b1, 1), g1, be1))
    o = bn(conv1d(h, w2, b2, 1), g2, be2)
    ident = conv1d(x, wadj, badj, 0)
    return jax.nn.relu(o + ident)


if __name__ == "__main__":
    N, Cin, Cout, L, K = 2, 4, 8, 16, 3

    key = jax.random.PRNGKey(0)
    ks = jax.random.split(key, 8)

    x = jax.random.normal(ks[0], (N, Cin, L), jnp.float32)

    # Deterministic synthetic parameter init (shapes per nn.Conv1d / nn.BatchNorm1d)
    w1 = 0.2 * jax.random.normal(ks[1], (Cout, Cin, K), jnp.float32)
    b1 = 0.1 * jax.random.normal(ks[2], (Cout,), jnp.float32)
    w2 = 0.2 * jax.random.normal(ks[3], (Cout, Cout, K), jnp.float32)
    b2 = 0.1 * jax.random.normal(ks[4], (Cout,), jnp.float32)
    wadj = 0.2 * jax.random.normal(ks[5], (Cout, Cin, 1), jnp.float32)
    badj = 0.1 * jax.random.normal(ks[6], (Cout,), jnp.float32)
    g1 = jnp.ones((Cout,), jnp.float32) + 0.05 * jax.random.normal(ks[7], (Cout,), jnp.float32)
    be1 = 0.05 * jnp.arange(Cout, dtype=jnp.float32)
    g2 = jnp.ones((Cout,), jnp.float32)
    be2 = jnp.zeros((Cout,), jnp.float32)

    params = (w1, b1, g1, be1, w2, b2, g2, be2, wadj, badj)

    out = residual_block(x, params)
    out = jax.block_until_ready(out)

    ref = jax.block_until_ready(residual_block_ref(x, params))
    np.testing.assert_allclose(np.asarray(out), np.asarray(ref), rtol=1e-3, atol=1e-3)

    print("KERNEL_OK")
</pallas_src>

<mosaic_0001>
module attributes {stable_mosaic.version = 11 : i64} {
  func.func @_residual_block_kernel(%arg0: memref<4x32xf32, #tpu.memory_space<vmem>>, %arg1: memref<8x12xf32, #tpu.memory_space<vmem>>, %arg2: memref<8x24xf32, #tpu.memory_space<vmem>>, %arg3: memref<8x4xf32, #tpu.memory_space<vmem>>, %arg4: memref<8x8xf32, #tpu.memory_space<vmem>>, %arg5: memref<8x32xf32, #tpu.memory_space<vmem>>) attributes {dimension_semantics = [], scalar_prefetch = 0 : i64, scratch_operands = 0 : i64, tpu.core_type = #tpu.core_type<tc>} {
    %c0 = arith.constant 0 : index
    %c0_0 = arith.constant 0 : index
    %0 = vector.load %arg0[%c0, %c0_0] : memref<4x32xf32, #tpu.memory_space<vmem>>, vector<4x32xf32>
    %c0_1 = arith.constant 0 : index
    %c0_2 = arith.constant 0 : index
    %1 = vector.load %arg1[%c0_1, %c0_2] : memref<8x12xf32, #tpu.memory_space<vmem>>, vector<8x12xf32>
    %c0_3 = arith.constant 0 : index
    %c0_4 = arith.constant 0 : index
    %2 = vector.load %arg2[%c0_3, %c0_4] : memref<8x24xf32, #tpu.memory_space<vmem>>, vector<8x24xf32>
    %c0_5 = arith.constant 0 : index
    %c0_6 = arith.constant 0 : index
    %3 = vector.load %arg3[%c0_5, %c0_6] : memref<8x4xf32, #tpu.memory_space<vmem>>, vector<8x4xf32>
    %c0_7 = arith.constant 0 : index
    %c0_8 = arith.constant 0 : index
    %4 = vector.load %arg4[%c0_7, %c0_8] : memref<8x8xf32, #tpu.memory_space<vmem>>, vector<8x8xf32>
    %5 = vector.extract_strided_slice %4 {offsets = [0, 0], sizes = [8, 1], strides = [1, 1]} : vector<8x8xf32> to vector<8x1xf32>
    %6 = vector.extract_strided_slice %4 {offsets = [0, 1], sizes = [8, 1], strides = [1, 1]} : vector<8x8xf32> to vector<8x1xf32>
    %7 = vector.extract_strided_slice %4 {offsets = [0, 2], sizes = [8, 1], strides = [1, 1]} : vector<8x8xf32> to vector<8x1xf32>
    %8 = vector.extract_strided_slice %4 {offsets = [0, 3], sizes = [8, 1], strides = [1, 1]} : vector<8x8xf32> to vector<8x1xf32>
    %9 = vector.extract_strided_slice %4 {offsets = [0, 4], sizes = [8, 1], strides = [1, 1]} : vector<8x8xf32> to vector<8x1xf32>
    %10 = vector.extract_strided_slice %4 {offsets = [0, 5], sizes = [8, 1], strides = [1, 1]} : vector<8x8xf32> to vector<8x1xf32>
    %11 = vector.extract_strided_slice %4 {offsets = [0, 6], sizes = [8, 1], strides = [1, 1]} : vector<8x8xf32> to vector<8x1xf32>
    %12 = tpu.iota {dimensions = array<i32: 1>} : vector<1x32xi32>
    %c16_i32 = arith.constant 16 : i32
    %c0_i32 = arith.constant 0 : i32
    %13 = arith.cmpi eq, %c16_i32, %c0_i32 : i32
    %c1_i32 = arith.constant 1 : i32
    %14 = arith.select %13, %c1_i32, %c16_i32 : i32
    %15 = vector.broadcast %14 : i32 to vector<1x32xi32>
    %16 = arith.remsi %12, %15 : vector<1x32xi32>
    %c0_i32_9 = arith.constant 0 : i32
    %17 = vector.broadcast %c0_i32_9 : i32 to vector<1x32xi32>
    %18 = arith.cmpi ne, %16, %17 : vector<1x32xi32>
    %c0_i32_10 = arith.constant 0 : i32
    %19 = vector.broadcast %c0_i32_10 : i32 to vector<1x32xi32>
    %20 = arith.cmpi slt, %16, %19 : vector<1x32xi32>
    %c0_i32_11 = arith.constant 0 : i32
    %21 = arith.cmpi slt, %14, %c0_i32_11 : i32
    %22 = vector.broadcast %21 : i1 to vector<1x32xi1>
    %23 = vector.broadcast %22 : vector<1x32xi1> to vector<1x32xi1>
    %24 = arith.xori %20, %23 : vector<1x32xi1>
    %25 = arith.andi %24, %18 : vector<1x32xi1>
    %26 = vector.broadcast %14 : i32 to vector<1x32xi32>
    %27 = arith.addi %16, %26 : vector<1x32xi32>
    %28 = arith.select %25, %27, %16 : vector<1x32xi1>, vector<1x32xi32>
    %c0_i32_12 = arith.constant 0 : i32
    %29 = vector.broadcast %c0_i32_12 : i32 to vector<1x32xi32>
    %30 = arith.cmpi eq, %28, %29 : vector<1x32xi32>
    %c15_i32 = arith.constant 15 : i32
    %31 = vector.broadcast %c15_i32 : i32 to vector<1x32xi32>
    %32 = arith.cmpi eq, %28, %31 : vector<1x32xi32>
    %cst = arith.constant 0.000000e+00 : f32
    %33 = vector.broadcast %cst : f32 to vector<4x1xf32>
    %34 = vector.extract_strided_slice %0 {offsets = [0, 0], sizes = [4, 31], strides = [1, 1]} : vector<4x32xf32> to vector<4x31xf32>
    %35 = tpu.concatenate %33, %34 in 1 : vector<4x1xf32>, vector<4x31xf32> -> vector<4x32xf32>
    %36 = vector.extract_strided_slice %0 {offsets = [0, 1], sizes = [4, 31], strides = [1, 1]} : vector<4x32xf32> to vector<4x31xf32>
    %37 = tpu.concatenate %36, %33 in 1 : vector<4x31xf32>, vector<4x1xf32> -> vector<4x32xf32>
    %cst_13 = arith.constant 0.000000e+00 : f32
    %38 = vector.shape_cast %30 : vector<1x32xi1> to vector<1x32xi1>
    %39 = vector.broadcast %38 : vector<1x32xi1> to vector<4x32xi1>
    %40 = vector.broadcast %cst_13 : f32 to vector<4x32xf32>
    %41 = arith.select %39, %40, %35 : vector<4x32xi1>, vector<4x32xf32>
    %cst_14 = arith.constant 0.000000e+00 : f32
    %42 = vector.shape_cast %32 : vector<1x32xi1> to vector<1x32xi1>
    %43 = vector.broadcast %42 : vector<1x32xi1> to vector<4x32xi1>
    %44 = vector.broadcast %cst_14 : f32 to vector<4x32xf32>
    %45 = arith.select %43, %44, %37 : vector<4x32xi1>, vector<4x32xf32>
    %46 = tpu.concatenate %41, %0, %45 in 0 : vector<4x32xf32>, vector<4x32xf32>, vector<4x32xf32> -> vector<12x32xf32>
    %cst_15 = arith.constant dense<0.000000e+00> : vector<8x32xf32>
    %47 = tpu.matmul %1, %46, %cst_15 {dimension_numbers = #tpu.dot_dimension_numbers<[1], [0], [0], [1], [0, 0, 1, 1], [], []>} : vector<8x12xf32>, vector<12x32xf32>, vector<8x32xf32> -> vector<8x32xf32>
    %48 = vector.broadcast %5 : vector<8x1xf32> to vector<8x32xf32>
    %49 = arith.addf %47, %48 : vector<8x32xf32>
    %cst_16 = arith.constant dense<0.000000e+00> : vector<8xf32>
    %50 = vector.multi_reduction <add>, %49, %cst_16 [1] : vector<8x32xf32> to vector<8xf32>
    %51 = vector.shape_cast %50 : vector<8xf32> to vector<8x1xf32>
    %cst_17 = arith.constant 3.200000e+01 : f32
    %52 = vector.broadcast %cst_17 : f32 to vector<8x1xf32>
    %53 = arith.divf %51, %52 : vector<8x1xf32>
    %54 = arith.mulf %49, %49 : vector<8x32xf32>
    %cst_18 = arith.constant dense<0.000000e+00> : vector<8xf32>
    %55 = vector.multi_reduction <add>, %54, %cst_18 [1] : vector<8x32xf32> to vector<8xf32>
    %56 = vector.shape_cast %55 : vector<8xf32> to vector<8x1xf32>
    %cst_19 = arith.constant 3.200000e+01 : f32
    %57 = vector.broadcast %cst_19 : f32 to vector<8x1xf32>
    %58 = arith.divf %56, %57 : vector<8x1xf32>
    %59 = arith.mulf %53, %53 : vector<8x1xf32>
    %60 = arith.subf %58, %59 : vector<8x1xf32>
    %cst_20 = arith.constant 9.99999974E-6 : f32
    %61 = vector.broadcast %cst_20 : f32 to vector<8x1xf32>
    %62 = arith.addf %60, %61 : vector<8x1xf32>
    %63 = math.rsqrt %62 : vector<8x1xf32>
    %64 = arith.mulf %6, %63 : vector<8x1xf32>
    %65 = arith.mulf %53, %64 : vector<8x1xf32>
    %66 = arith.subf %7, %65 : vector<8x1xf32>
    %67 = vector.broadcast %64 : vector<8x1xf32> to vector<8x32xf32>
    %68 = arith.mulf %49, %67 : vector<8x32xf32>
    %69 = vector.broadcast %66 : vector<8x1xf32> to vector<8x32xf32>
    %70 = arith.addf %68, %69 : vector<8x32xf32>
    %cst_21 = arith.constant 0.000000e+00 : f32
    %71 = vector.broadcast %cst_21 : f32 to vector<8x32xf32>
    %72 = arith.maximumf %70, %71 : vector<8x32xf32>
    %cst_22 = arith.constant 0.000000e+00 : f32
    %73 = vector.broadcast %cst_22 : f32 to vector<8x1xf32>
    %74 = vector.extract_strided_slice %72 {offsets = [0, 0], sizes = [8, 31], strides = [1, 1]} : vector<8x32xf32> to vector<8x31xf32>
    %75 = tpu.concatenate %73, %74 in 1 : vector<8x1xf32>, vector<8x31xf32> -> vector<8x32xf32>
    %76 = vector.extract_strided_slice %72 {offsets = [0, 1], sizes = [8, 31], strides = [1, 1]} : vector<8x32xf32> to vector<8x31xf32>
    %77 = tpu.concatenate %76, %73 in 1 : vector<8x31xf32>, vector<8x1xf32> -> vector<8x32xf32>
    %cst_23 = arith.constant 0.000000e+00 : f32
    %78 = vector.shape_cast %30 : vector<1x32xi1> to vector<1x32xi1>
    %79 = vector.broadcast %78 : vector<1x32xi1> to vector<8x32xi1>
    %80 = vector.broadcast %cst_23 : f32 to vector<8x32xf32>
    %81 = arith.select %79, %80, %75 : vector<8x32xi1>, vector<8x32xf32>
    %cst_24 = arith.constant 0.000000e+00 : f32
    %82 = vector.shape_cast %32 : vector<1x32xi1> to vector<1x32xi1>
    %83 = vector.broadcast %82 : vector<1x32xi1> to vector<8x32xi1>
    %84 = vector.broadcast %cst_24 : f32 to vector<8x32xf32>
    %85 = arith.select %83, %84, %77 : vector<8x32xi1>, vector<8x32xf32>
    %86 = tpu.concatenate %81, %72, %85 in 0 : vector<8x32xf32>, vector<8x32xf32>, vector<8x32xf32> -> vector<24x32xf32>
    %cst_25 = arith.constant dense<0.000000e+00> : vector<8x32xf32>
    %87 = tpu.matmul %2, %86, %cst_25 {dimension_numbers = #tpu.dot_dimension_numbers<[1], [0], [0], [1], [0, 0, 1, 1], [], []>} : vector<8x24xf32>, vector<24x32xf32>, vector<8x32xf32> -> vector<8x32xf32>
    %88 = vector.broadcast %8 : vector<8x1xf32> to vector<8x32xf32>
    %89 = arith.addf %87, %88 : vector<8x32xf32>
    %cst_26 = arith.constant dense<0.000000e+00> : vector<8xf32>
    %90 = vector.multi_reduction <add>, %89, %cst_26 [1] : vector<8x32xf32> to vector<8xf32>
    %91 = vector.shape_cast %90 : vector<8xf32> to vector<8x1xf32>
    %cst_27 = arith.constant 3.200000e+01 : f32
    %92 = vector.broadcast %cst_27 : f32 to vector<8x1xf32>
    %93 = arith.divf %91, %92 : vector<8x1xf32>
    %94 = arith.mulf %89, %89 : vector<8x32xf32>
    %cst_28 = arith.constant dense<0.000000e+00> : vector<8xf32>
    %95 = vector.multi_reduction <add>, %94, %cst_28 [1] : vector<8x32xf32> to vector<8xf32>
    %96 = vector.shape_cast %95 : vector<8xf32> to vector<8x1xf32>
    %cst_29 = arith.constant 3.200000e+01 : f32
    %97 = vector.broadcast %cst_29 : f32 to vector<8x1xf32>
    %98 = arith.divf %96, %97 : vector<8x1xf32>
    %99 = arith.mulf %93, %93 : vector<8x1xf32>
    %100 = arith.subf %98, %99 : vector<8x1xf32>
    %cst_30 = arith.constant 9.99999974E-6 : f32
    %101 = vector.broadcast %cst_30 : f32 to vector<8x1xf32>
    %102 = arith.addf %100, %101 : vector<8x1xf32>
    %103 = math.rsqrt %102 : vector<8x1xf32>
    %104 = arith.mulf %9, %103 : vector<8x1xf32>
    %105 = arith.mulf %93, %104 : vector<8x1xf32>
    %106 = arith.subf %10, %105 : vector<8x1xf32>
    %107 = vector.broadcast %104 : vector<8x1xf32> to vector<8x32xf32>
    %108 = arith.mulf %89, %107 : vector<8x32xf32>
    %109 = vector.broadcast %106 : vector<8x1xf32> to vector<8x32xf32>
    %110 = arith.addf %108, %109 : vector<8x32xf32>
    %cst_31 = arith.constant dense<0.000000e+00> : vector<8x32xf32>
    %111 = tpu.matmul %3, %0, %cst_31 {dimension_numbers = #tpu.dot_dimension_numbers<[1], [0], [0], [1], [0, 0, 1, 1], [], []>} : vector<8x4xf32>, vector<4x32xf32>, vector<8x32xf32> -> vector<8x32xf32>
    %112 = vector.broadcast %11 : vector<8x1xf32> to vector<8x32xf32>
    %113 = arith.addf %111, %112 : vector<8x32xf32>
    %114 = arith.addf %110, %113 : vector<8x32xf32>
    %cst_32 = arith.constant 0.000000e+00 : f32
    %115 = vector.broadcast %cst_32 : f32 to vector<8x32xf32>
    %116 = arith.maximumf %114, %115 : vector<8x32xf32>
    %c0_33 = arith.constant 0 : index
    %c0_34 = arith.constant 0 : index
    %117 = vector.load %arg5[%c0_33, %c0_34] : memref<8x32xf32, #tpu.memory_space<vmem>>, vector<8x32xf32>
    tpu.vector_store %arg5[%c0_33, %c0_34], %116 {strides = array<i32>} : memref<8x32xf32, #tpu.memory_space<vmem>>, vector<8x32xf32>,
    return
  }
}

</mosaic_0001>

<llo_original>
// kernel: tpu_custom_call.1
$region0: #{tpu_custom_call.1}
  #allocation0 [shape = 'u32[]', space=smem, size = 0x4, offset = 0x4, fixed_abs, tag = 'smem constant byte address 0x4 - core index']
  #allocation1 [shape = 'u32[144,128]{1,0:T(1,128)}', space=vmem, size = 0x12000, scoped, tag = 'internal scratch']
  %s0 = inlined_call_operand.hbm [shape: f32[4,32], index: 0, kind: input, shape index: {}]
  %s1 = inlined_call_operand.vmem [shape: f32[8,12], index: 1, kind: input, shape index: {}]
  %s2 = inlined_call_operand.vmem [shape: f32[8,24], index: 2, kind: input, shape index: {}]
  %s3 = inlined_call_operand.vmem [shape: f32[8,4], index: 3, kind: input, shape index: {}]
  %s4 = inlined_call_operand.vmem [shape: f32[8,8], index: 4, kind: input, shape index: {}]
  %s5 = inlined_call_operand.hbm [shape: f32[8,32], index: 5, kind: output, shape index: {}]
  %s6 = sld [smem:[#allocation0]]
  $region34: #{tpu_custom_call.1} parent=0
    _
  %s8 = ssub.s32 1, %s6
  %s9 = scalar_select 0, %s8, %s6
  $region1: #{tpu_custom_call.1} parent=0
    #allocation2 [shape = 'u8[2048]{0}', space=vmem, size = 0x800, scoped, tag = 'input window, operand 0, single buffered']
    #allocation3 [shape = 's32[1]{0}', space=sflag, size = 0x4, scoped, tag = 'scoped memory for tpu_custom_call.1']
    #allocation4 [shape = 's32[1]{0}', space=sflag, size = 0x4, scoped, tag = 'scoped memory for tpu_custom_call.1']
    #allocation5 [shape = 'u8[4096]{0}', space=vmem, size = 0x1000, scoped, tag = 'output window, operand 0, single buffered']
    %10 = vsyncpa [#allocation3], 0
    %11 = vsyncpa [#allocation4], 0
    // Predicated region
    $region2: #{tpu_custom_call.1} parent=1 // pred_check
      _
    $region3: #{tpu_custom_call.1} parent=1 // pred_check_branch
      %13 = sbr.rel (0) target = $region5
    $region4: #{tpu_custom_call.1} parent=1 // pred_region
      %s15 = ssub.s32 64, 64
      %16 = vsyncadd [#allocation3], %s15
      %s18 = sshll.u32 [#allocation2], 4
      %s19 = int_to_ptr.vmem [resolvable:$true] %s18
      %21 = dma.hbm_to_vmem [thread:$0]  %s0, 64, %s19, [#allocation3]
    $region5: #{tpu_custom_call.1} parent=1 // pred_fallthru
      _
    // Predicated region
    $region6: #{tpu_custom_call.1} parent=1 // pred_check
      _
    $region7: #{tpu_custom_call.1} parent=1 // pred_check_branch
      %23 = sbr.rel (0) target = $region9
    $region8: #{tpu_custom_call.1} parent=1 // pred_region
      _
    $region9: #{tpu_custom_call.1} parent=1 // pred_fallthru
      _
    // Predicated region
    $region10: #{tpu_custom_call.1} parent=1 // pred_check
      _
    $region11: #{tpu_custom_call.1} parent=1 // pred_check_branch
      %25 = sbr.rel (0) target = $region13
    $region12: #{tpu_custom_call.1} parent=1 // pred_region
      _
    $region13: #{tpu_custom_call.1} parent=1 // pred_fallthru
      _
    // Predicated region
    $region14: #{tpu_custom_call.1} parent=1 // pred_check
      _
    $region15: #{tpu_custom_call.1} parent=1 // pred_check_branch
      %27 = sbr.rel (0) target = $region17
    $region16: #{tpu_custom_call.1} parent=1 // pred_region
      _
    $region17: #{tpu_custom_call.1} parent=1 // pred_fallthru
      _
    // Predicated region
    $region18: #{tpu_custom_call.1} parent=1 // pred_check
      _
    $region19: #{tpu_custom_call.1} parent=1 // pred_check_branch
      %29 = sbr.rel (0) target = $region21
    $region20: #{tpu_custom_call.1} parent=1 // pred_region
      _
    $region21: #{tpu_custom_call.1} parent=1 // pred_fallthru
      _
    // Predicated region
    $region22: #{tpu_custom_call.1} parent=1 // pred_check
      _
    $region23: #{tpu_custom_call.1} parent=1 // pred_check_branch
      %31 = sbr.rel (0) target = $region25
    $region24: #{tpu_custom_call.1} parent=1 // pred_region
      %32 = dma.done [#allocation3], 64
    $region25: #{tpu_custom_call.1} parent=1 // pred_fallthru
      _
    %v33 = vld [vmem:[#allocation2] sm:$0xf]
    %v34 = vld [vmem:[%s1] sm:$0xff]
    %v35 = vld [vmem:[%s2] sm:$0xff]
    %v36 = vld [vmem:[%s3] sm:$0xff]
    %v37 = vld [vmem:[%s4] sm:$0xff]
    %v38 = vlaneseq
    %v39 = vand.u32 %v38, 127
    %vm40 = vcmp.lt.s32.totalorder %v39, 0
    %v41 = vsub.s32 0, %v39
    %v42 = vsel %vm40, %v41, %v39
    %v43 = vshrl.u32 %v42, 4
    %v44 = vand.u32 %v42, 15
    %v45 = vsub.s32 0, %v44
    %v46 = vsel %vm40, %v45, %v44
    %vm47 = vcmp.ne.s32.totalorder %v46, 0
    %vm48 = vcmp.lt.s32.totalorder %v46, 0
    %vm49 = vmand %vm48, %vm47
    %v50 = vadd.s32 %v46, 16
    %v51 = vsel %vm49, %v50, %v46
    %vm52 = vcmp.eq.s32.totalorder %v51, 0
    %vm53 = vcmp.eq.s32.totalorder %v51, 15
    %55 = vrot.lane.b32.xlu0 %v33, 1
    %v56 = vpop.permute.xlu0 %55
    %vm58 = vcmask 7168
    %v59 = vsel %vm58, 0.0, %v56
    %60 = vrot.lane.b32.xlu0 %v33, 127
    %v61 = vpop.permute.xlu0 %60
    %vm63 = vcmask 252928
    %v64 = vsel %vm63, %v61, 0.0
    %v65 = vsel %vm52, 1, 0
    %vm66 = vcmp.eq.s32.totalorder %v65, 1
    %v67 = vsel %vm66, 0.0, %v59
    %v68 = vsel %vm53, 1, 0
    %vm69 = vcmp.eq.s32.totalorder %v68, 1
    %v70 = vsel %vm69, 0.0, %v64
    %v71 = vrot.slane %v33, 4
    %vm73 = vcmask 1043456
    %v74 = vsel %vm73, %v67, %v71
    %76 = vset.pattern.permute.xlu0 0
    %77 = vperm.xlu0 %76, %v37
    %v78 = vpop.permute.xlu0 %77
    %vm80 = vcmask 97280
    %v82 = vsel %vm80, %v34, 0
    %v85 = vsel %vm73, %v70, 0
    %87 = vmatprep.subr.mxu0 0.0
    %88 = vmatpush1.msra.mxu0 %v74
    %89 = vmatprep.subr.mxu0 0.0
    %90 = vmatpush1.msra.mxu0 %v85
    %91 = vmatprep.subr.mxu0 0.0
    %92 = vmatpush1.msra.mxu0 0.0
    %93 = vmatprep.subr.mxu0 0.0
    %94 = vmatpush1.msra.mxu0 0.0
    %95 = vmatprep.subr.mxu0 0.0
    %96 = vmatpush1.msra.mxu0 0.0
    %97 = vmatprep.subr.mxu0 0.0
    %98 = vmatpush1.msra.mxu0 0.0
    %99 = vmatprep.subr.mxu0 0.0
    %100 = vmatpush1.msra.mxu0 0.0
    %101 = vmatprep.subr.mxu0 0.0
    %102 = vmatpush1.msra.mxu0 0.0
    %103 = vmatprep.subr.mxu0 0.0
    %104 = vmatpush1.msra.mxu0 0.0
    %105 = vmatprep.subr.mxu0 0.0
    %106 = vmatpush1.msra.mxu0 0.0
    %107 = vmatprep.subr.mxu0 0.0
    %108 = vmatpush1.msra.mxu0 0.0
    %109 = vmatprep.subr.mxu0 0.0
    %110 = vmatpush1.msra.mxu0 0.0
    %111 = vmatprep.subr.mxu0 0.0
    %112 = vmatpush1.msra.mxu0 0.0
    %113 = vmatprep.subr.mxu0 0.0
    %114 = vmatpush1.msra.mxu0 0.0
    %115 = vmatprep.subr.mxu0 0.0
    %116 = vmatpush1.msra.mxu0 0.0
    %117 = vmatprep.subr.mxu0 0.0
    %118 = vmatpush1.msra.mxu0 0.0
    %119 = vmatprep.subr.mxu0 0.0
    %120 = vmatpush1.msra.mxu0 0.0
    %121 = vmatprep.subr.mxu0 0.0
    %122 = vmatpush1.msra.mxu0 0.0
    %123 = vmatprep.subr.mxu0 0.0
    %124 = vmatpush1.msra.mxu0 0.0
    %125 = vmatprep.subr.mxu0 0.0
    %126 = vmatpush1.msra.mxu0 0.0
    %127 = vmatprep.subr.mxu0 0.0
    %128 = vmatpush1.msra.mxu0 0.0
    %129 = vmatprep.subr.mxu0 0.0
    %130 = vmatpush1.msra.mxu0 0.0
    %131 = vmatprep.subr.mxu0 0.0
    %132 = vmatpush1.msra.mxu0 0.0
    %133 = vmatprep.subr.mxu0 0.0
    %134 = vmatpush1.msra.mxu0 0.0
    %135 = vmatprep.subr.mxu0 0.0
    %136 = vmatpush1.msra.mxu0 0.0
    %137 = vmatprep.subr.mxu0 0.0
    %138 = vmatpush1.msra.mxu0 0.0
    %139 = vmatprep.subr.mxu0 0.0
    %140 = vmatpush1.msra.mxu0 0.0
    %141 = vmatprep.subr.mxu0 0.0
    %142 = vmatpush1.msra.mxu0 0.0
    %143 = vmatprep.subr.mxu0 0.0
    %144 = vmatpush1.msra.mxu0 0.0
    %145 = vmatprep.subr.mxu0 0.0
    %146 = vmatpush1.msra.mxu0 0.0
    %147 = vmatprep.subr.mxu0 0.0
    %148 = vmatpush1.msra.mxu0 0.0
    %149 = vmatprep.subr.mxu0 0.0
    %150 = vmatpush1.msra.mxu0 0.0
    %151 = vmatprep.mubr.f32.mxu0 0.0
    %152 = vmatmul.mubr.f32.gmra.mrb[0].mxu0 %v82
    %v153 = vpop.f32.mrb[0].mxu0
    %v154 = vadd.f32 %v78, %v153
    %v155 = vpop.f32.mrb[0].mxu0
    %156 = vdwg.mxu0
    %vm157 = vcmask 261120
    %v158 = vsel %vm157, %v154, 0.0
    %159 = vadd.xlane.f32.xlu0 %v158
    %v160 = vpop.xlane.xlu0 %159
    %v161 = vrcp.pop 32.0
    %v162 = vmul.f32 %v160, %v161
    %v163 = vmul.f32 %v154, %v154
    %v164 = vsel %vm157, %v163, 0.0
    %165 = vadd.xlane.f32.xlu0 %v164
    %v166 = vpop.xlane.xlu0 %165
    %v167 = vmul.f32 %v166, %v161
    %v168 = vmul.f32 %v162, %v162
    %v169 = vsub.f32 %v167, %v168
    %v170 = vadd.f32 %v169, 1e-05
    %v171 = vrsqrt.pop %v170
    %v172 = vmul.f32 %v37, %v171
    %v173 = vmul.f32 %v162, %v172
    %175 = vrot.lane.b32.xlu0 %v173, 1
    %v176 = vpop.permute.xlu0 %175
    %v178 = vsub.f32 %v37, %v176
    %180 = vset.pattern.permute.xlu0 1
    %181 = vperm.xlu0 %180, %v172
    %v182 = vpop.permute.xlu0 %181
    %v184 = vmul.f32 %v154, %v182
    %186 = vset.pattern.permute.xlu0 2
    %187 = vperm.xlu0 %186, %v178
    %v188 = vpop.permute.xlu0 %187
    %v190 = vadd.f32 %v184, %v188
    %v191 = vmax.f32 %v190, 0.0
    %193 = vrot.lane.b32.xlu0 %v191, 1
    %v194 = vpop.permute.xlu0 %193
    %v196 = vsel %vm58, 0.0, %v194
    %197 = vrot.lane.b32.xlu0 %v191, 127
    %v198 = vpop.permute.xlu0 %197
    %v200 = vsel %vm63, %v198, 0.0
    %v201 = vsel %vm66, 0.0, %v196
    %v202 = vsel %vm69, 0.0, %v200
    %203 = vset.pattern.permute.xlu0 3
    %204 = vperm.xlu0 %203, %v37
    %v205 = vpop.permute.xlu0 %204
    %vm207 = vcmask 195584
    %v209 = vsel %vm207, %v35, 0
    %211 = vmatprep.subr.mxu0 0.0
    %212 = vmatpush1.msra.mxu0 %v201
    %213 = vmatprep.subr.mxu0 0.0
    %214 = vmatpush1.msra.mxu0 %v191
    %215 = vmatprep.subr.mxu0 0.0
    %216 = vmatpush1.msra.mxu0 %v202
    %217 = vmatprep.subr.mxu0 0.0
    %218 = vmatpush1.msra.mxu0 0.0
    %219 = vmatprep.subr.mxu0 0.0
    %220 = vmatpush1.msra.mxu0 0.0
    %221 = vmatprep.subr.mxu0 0.0
    %222 = vmatpush1.msra.mxu0 0.0
    %223 = vmatprep.subr.mxu0 0.0
    %224 = vmatpush1.msra.mxu0 0.0
    %225 = vmatprep.subr.mxu0 0.0
    %226 = vmatpush1.msra.mxu0 0.0
    %227 = vmatprep.subr.mxu0 0.0
    %228 = vmatpush1.msra.mxu0 0.0
    %229 = vmatprep.subr.mxu0 0.0
    %230 = vmatpush1.msra.mxu0 0.0
    %231 = vmatprep.subr.mxu0 0.0
    %232 = vmatpush1.msra.mxu0 0.0
    %233 = vmatprep.subr.mxu0 0.0
    %234 = vmatpush1.msra.mxu0 0.0
    %235 = vmatprep.subr.mxu0 0.0
    %236 = vmatpush1.msra.mxu0 0.0
    %237 = vmatprep.subr.mxu0 0.0
    %238 = vmatpush1.msra.mxu0 0.0
    %239 = vmatprep.subr.mxu0 0.0
    %240 = vmatpush1.msra.mxu0 0.0
    %241 = vmatprep.subr.mxu0 0.0
    %242 = vmatpush1.msra.mxu0 0.0
    %243 = vmatprep.subr.mxu0 0.0
    %244 = vmatpush1.msra.mxu0 0.0
    %245 = vmatprep.subr.mxu0 0.0
    %246 = vmatpush1.msra.mxu0 0.0
    %247 = vmatprep.subr.mxu0 0.0
    %248 = vmatpush1.msra.mxu0 0.0
    %249 = vmatprep.subr.mxu0 0.0
    %250 = vmatpush1.msra.mxu0 0.0
    %251 = vmatprep.subr.mxu0 0.0
    %252 = vmatpush1.msra.mxu0 0.0
    %253 = vmatprep.subr.mxu0 0.0
    %254 = vmatpush1.msra.mxu0 0.0
    %255 = vmatprep.subr.mxu0 0.0
    %256 = vmatpush1.msra.mxu0 0.0
    %257 = vmatprep.subr.mxu0 0.0
    %258 = vmatpush1.msra.mxu0 0.0
    %259 = vmatprep.subr.mxu0 0.0
    %260 = vmatpush1.msra.mxu0 0.0
    %261 = vmatprep.subr.mxu0 0.0
    %262 = vmatpush1.msra.mxu0 0.0
    %263 = vmatprep.subr.mxu0 0.0
    %264 = vmatpush1.msra.mxu0 0.0
    %265 = vmatprep.subr.mxu0 0.0
    %266 = vmatpush1.msra.mxu0 0.0
    %267 = vmatprep.subr.mxu0 0.0
    %268 = vmatpush1.msra.mxu0 0.0
    %269 = vmatprep.subr.mxu0 0.0
    %270 = vmatpush1.msra.mxu0 0.0
    %271 = vmatprep.subr.mxu0 0.0
    %272 = vmatpush1.msra.mxu0 0.0
    %273 = vmatprep.subr.mxu0 0.0
    %274 = vmatpush1.msra.mxu0 0.0
    %275 = vmatprep.mubr.f32.mxu0 0.0
    %276 = vmatmul.mubr.f32.gmra.mrb[0].mxu0 %v209
    %v277 = vpop.f32.mrb[0].mxu0
    %v278 = vadd.f32 %v205, %v277
    %v279 = vpop.f32.mrb[0].mxu0
    %280 = vdwg.mxu0
    %v281 = vsel %vm157, %v278, 0.0
    %282 = vadd.xlane.f32.xlu0 %v281
    %v283 = vpop.xlane.xlu0 %282
    %v284 = vmul.f32 %v283, %v161
    %v285 = vmul.f32 %v278, %v278
    %v286 = vsel %vm157, %v285, 0.0
    %287 = vadd.xlane.f32.xlu0 %v286
    %v288 = vpop.xlane.xlu0 %287
    %v289 = vmul.f32 %v288, %v161
    %v290 = vmul.f32 %v284, %v284
    %v291 = vsub.f32 %v289, %v290
    %v292 = vadd.f32 %v291, 1e-05
    %v293 = vrsqrt.pop %v292
    %v294 = vmul.f32 %v37, %v293
    %v295 = vmul.f32 %v284, %v294
    %297 = vrot.lane.b32.xlu0 %v295, 1
    %v298 = vpop.permute.xlu0 %297
    %v300 = vsub.f32 %v37, %v298
    %302 = vset.pattern.permute.xlu0 4
    %303 = vperm.xlu0 %302, %v294
    %v304 = vpop.permute.xlu0 %303
    %v306 = vmul.f32 %v278, %v304
    %308 = vset.pattern.permute.xlu0 5
    %309 = vperm.xlu0 %308, %v300
    %v310 = vpop.permute.xlu0 %309
    %v312 = vadd.f32 %v306, %v310
    %313 = vset.pattern.permute.xlu0 6
    %314 = vperm.xlu0 %313, %v37
    %v315 = vpop.permute.xlu0 %314
    %vm317 = vcmask 31744
    %v319 = vsel %vm317, %v36, 0
    %v321 = vsel %vm73, %v33, 0
    %323 = vmatprep.subr.mxu0 0.0
    %324 = vmatpush1.msra.mxu0 %v321
    %325 = vmatprep.subr.mxu0 0.0
    %326 = vmatpush1.msra.mxu0 0.0
    %327 = vmatprep.subr.mxu0 0.0
    %328 = vmatpush1.msra.mxu0 0.0
    %329 = vmatprep.subr.mxu0 0.0
    %330 = vmatpush1.msra.mxu0 0.0
    %331 = vmatprep.subr.mxu0 0.0
    %332 = vmatpush1.msra.mxu0 0.0
    %333 = vmatprep.subr.mxu0 0.0
    %334 = vmatpush1.msra.mxu0 0.0
    %335 = vmatprep.subr.mxu0 0.0
    %336 = vmatpush1.msra.mxu0 0.0
    %337 = vmatprep.subr.mxu0 0.0
    %338 = vmatpush1.msra.mxu0 0.0
    %339 = vmatprep.subr.mxu0 0.0
    %340 = vmatpush1.msra.mxu0 0.0
    %341 = vmatprep.subr.mxu0 0.0
    %342 = vmatpush1.msra.mxu0 0.0
    %343 = vmatprep.subr.mxu0 0.0
    %344 = vmatpush1.msra.mxu0 0.0
    %345 = vmatprep.subr.mxu0 0.0
    %346 = vmatpush1.msra.mxu0 0.0
    %347 = vmatprep.subr.mxu0 0.0
    %348 = vmatpush1.msra.mxu0 0.0
    %349 = vmatprep.subr.mxu0 0.0
    %350 = vmatpush1.msra.mxu0 0.0
    %351 = vmatprep.subr.mxu0 0.0
    %352 = vmatpush1.msra.mxu0 0.0
    %353 = vmatprep.subr.mxu0 0.0
    %354 = vmatpush1.msra.mxu0 0.0
    %355 = vmatprep.subr.mxu0 0.0
    %356 = vmatpush1.msra.mxu0 0.0
    %357 = vmatprep.subr.mxu0 0.0
    %358 = vmatpush1.msra.mxu0 0.0
    %359 = vmatprep.subr.mxu0 0.0
    %360 = vmatpush1.msra.mxu0 0.0
    %361 = vmatprep.subr.mxu0 0.0
    %362 = vmatpush1.msra.mxu0 0.0
    %363 = vmatprep.subr.mxu0 0.0
    %364 = vmatpush1.msra.mxu0 0.0
    %365 = vmatprep.subr.mxu0 0.0
    %366 = vmatpush1.msra.mxu0 0.0
    %367 = vmatprep.subr.mxu0 0.0
    %368 = vmatpush1.msra.mxu0 0.0
    %369 = vmatprep.subr.mxu0 0.0
    %370 = vmatpush1.msra.mxu0 0.0
    %371 = vmatprep.subr.mxu0 0.0
    %372 = vmatpush1.msra.mxu0 0.0
    %373 = vmatprep.subr.mxu0 0.0
    %374 = vmatpush1.msra.mxu0 0.0
    %375 = vmatprep.subr.mxu0 0.0
    %376 = vmatpush1.msra.mxu0 0.0
    %377 = vmatprep.subr.mxu0 0.0
    %378 = vmatpush1.msra.mxu0 0.0
    %379 = vmatprep.subr.mxu0 0.0
    %380 = vmatpush1.msra.mxu0 0.0
    %381 = vmatprep.subr.mxu0 0.0
    %382 = vmatpush1.msra.mxu0 0.0
    %383 = vmatprep.subr.mxu0 0.0
    %384 = vmatpush1.msra.mxu0 0.0
    %385 = vmatprep.subr.mxu0 0.0
    %386 = vmatpush1.msra.mxu0 0.0
    %387 = vmatprep.mubr.f32.mxu0 0.0
    %388 = vmatmul.mubr.f32.gmra.mrb[0].mxu0 %v319
    %v389 = vpop.f32.mrb[0].mxu0
    %v390 = vadd.f32 %v315, %v389
    %v391 = vpop.f32.mrb[0].mxu0
    %392 = vdwg.mxu0
    %v393 = vadd.f32 %v312, %v390
    %v394 = vmax.f32 %v393, 0.0
    %395 = vst.msk [vmem:[#allocation5] sm:$0xff] %vm157, %v394
    // Predicated region
    $region26: #{tpu_custom_call.1} parent=1 // pred_check
      _
    $region27: #{tpu_custom_call.1} parent=1 // pred_check_branch
      %397 = sbr.rel (0) target = $region29
    $region28: #{tpu_custom_call.1} parent=1 // pred_region
      %s399 = ssub.s32 128, 128
      %400 = vsyncadd [#allocation4], %s399
      %s402 = sshll.u32 [#allocation5], 4
      %s403 = int_to_ptr.vmem [resolvable:$true] %s402
      %405 = dma.vmem_to_hbm [thread:$0]  %s403, 128, %s5, [#allocation4]
    $region29: #{tpu_custom_call.1} parent=1 // pred_fallthru
      _
    // Predicated region
    $region30: #{tpu_custom_call.1} parent=1 // pred_check
      _
    $region31: #{tpu_custom_call.1} parent=1 // pred_check_branch
      %407 = sbr.rel (0) target = $region33
    $region32: #{tpu_custom_call.1} parent=1 // pred_region
      %408 = dma.done [#allocation4], 128
    $region33: #{tpu_custom_call.1} parent=1 // pred_fallthru
      _
    %409 = vsyncpa [#allocation3], 1
    %410 = vsyncpa [#allocation4], 1

</llo_original>
